<compile_context>
chip_gen: v6e
topology: v6e:2x2x1
jax: 0.10.0
libtpu: 0.0.40
codegen_flags: <defaults>
</compile_context>

<pallas_src>
import copy
import functools

import jax
import jax.numpy as jnp
from jax.experimental import pallas as pl
from jax.experimental.pallas import tpu as pltpu


def _round_up(x, m):
    return (x + m - 1) // m * m


# ----------------------------- Pallas kernel -------------------------------
def _linear_kernel(x_ref, wt_ref, b_ref, o_ref, acc_ref):
    # x_ref : (tm, tk)  activation tile, native dtype (cast on-chip)
    # wt_ref: (tk, tn)  pre-transposed weight tile (no in-kernel transpose)
    # b_ref : (1, tn)   bias tile
    # acc_ref: (tm, tn) f32 accumulator scratch, resident across the K axis
    k = pl.program_id(2)

    @pl.when(k == 0)
    def _():
        acc_ref[...] = jnp.zeros_like(acc_ref)

    # Fold the PEFT "args.to(weight.dtype)" cast into the kernel: free VPU work
    # hidden under the MXU, instead of a separate un-fused XLA cast over HBM.
    acc_ref[...] += jnp.dot(
        x_ref[...].astype(wt_ref.dtype),
        wt_ref[...],
        preferred_element_type=jnp.float32,
    )

    @pl.when(k == pl.num_programs(2) - 1)
    def _():
        o_ref[...] = (acc_ref[...] + b_ref[...].astype(jnp.float32)).astype(
            o_ref.dtype
        )


@functools.partial(jax.jit, static_argnums=(3, 4, 5, 6))
def _pallas_linear(x, w_t, bias2d, out_dtype, tm, tn, tk):
    M, K = x.shape
    _, N = w_t.shape

    # Pad to tile multiples (handles arbitrary batch / vocab sizes).
    Mp, Np, Kp = _round_up(M, tm), _round_up(N, tn), _round_up(K, tk)
    if (Mp, Kp) != (M, K):
        x = jnp.pad(x, ((0, Mp - M), (0, Kp - K)))
    if (Kp, Np) != (K, N):
        w_t = jnp.pad(w_t, ((0, Kp - K), (0, Np - N)))
    if Np != N:
        bias2d = jnp.pad(bias2d, ((0, 0), (0, Np - N)))

    grid = (Np // tn, Mp // tm, Kp // tk)  # reduction axis (K) last

    # VMEM budget: double-buffered inputs/output + f32 accumulator (+ margin).
    out_itemsize = jnp.dtype(out_dtype).itemsize
    vmem_bytes = (
        2
        * (
            tm * tk * x.dtype.itemsize
            + tk * tn * w_t.dtype.itemsize
            + tn * bias2d.dtype.itemsize
            + tm * tn * out_itemsize
        )
        + tm * tn * 4
    )
    # Cap well under v7x's 64 MiB physical VMEM.
    vmem_limit = int(min(48 * 1024 * 1024, max(2 * vmem_bytes, 16 * 1024 * 1024)))

    cost = pl.CostEstimate(
        flops=2 * M * N * K,
        transcendentals=0,
        bytes_accessed=(
            M * K * x.dtype.itemsize
            + K * N * w_t.dtype.itemsize
            + N * bias2d.dtype.itemsize
            + M * N * out_itemsize
        ),
    )

    out = pl.pallas_call(
        _linear_kernel,
        out_shape=jax.ShapeDtypeStruct((Mp, Np), out_dtype),
        grid_spec=pltpu.PrefetchScalarGridSpec(
            num_scalar_prefetch=0,
            grid=grid,
            in_specs=[
                pl.BlockSpec((tm, tk), lambda n, m, k: (m, k)),  # x
                pl.BlockSpec((tk, tn), lambda n, m, k: (k, n)),  # weight^T
                pl.BlockSpec((1, tn), lambda n, m, k: (0, n)),   # bias
            ],
            out_specs=pl.BlockSpec((tm, tn), lambda n, m, k: (m, n)),
            scratch_shapes=[pltpu.VMEM((tm, tn), jnp.float32)],
        ),
        compiler_params=pltpu.CompilerParams(
            dimension_semantics=("parallel", "parallel", "arbitrary"),
            vmem_limit_bytes=vmem_limit,
        ),
        cost_estimate=cost,
    )(x, w_t, bias2d)

    if (Mp, Np) != (M, N):
        out = out[:M, :N]
    return out


def pallas_linear(x, w_t, bias, out_dtype, *, tm=256, tn=512, tk=512):
    """y = x @ w_t + bias, with w_t already [in_features, out_features]."""
    M, K = x.shape
    _, N = w_t.shape
    # Clamp tiles to (padded) problem dims while keeping (8, 128) alignment.
    tm = min(tm, _round_up(M, 8))
    tn = min(tn, _round_up(N, 128))
    tk = min(tk, _round_up(K, 128))
    return _pallas_linear(
        x, w_t, bias.reshape(1, N), jnp.dtype(out_dtype), tm, tn, tk
    )


# ------------------------ ModulesToSaveWrapper (JAX) ------------------------
class LinearParams:
    """Stand-in for nn.Linear's parameters (weight: [out, in], bias: [out])."""

    def __init__(self, weight, bias):
        self.weight = weight
        self.bias = bias
        # Pre-transpose ONCE to [in, out] so the kernel never transposes tiles.
        self.weight_t = jnp.asarray(weight.T)

    def __call__(self, x):
        # Hot path runs in the Pallas kernel; output dtype follows weight dtype
        # (matches PEFT: inputs are cast to the adapter weight's dtype).
        return pallas_linear(x, self.weight_t, self.bias, self.weight.dtype)


class ModulesToSaveWrapper:
    def __init__(self, module_to_save, adapter_name):
        self.original_module = module_to_save
        self.modules_to_save = {}
        self._active_adapter = adapter_name
        self._disable_adapters = False
        self.update(adapter_name)

    @property
    def disable_adapters(self):
        return self._disable_adapters

    @property
    def active_adapter(self):
        return self._active_adapter

    def update(self, adapter_name):
        # deepcopy of the original module (requires_grad bookkeeping is a
        # training-time concern with no forward-pass effect).
        self.modules_to_save[adapter_name] = copy.deepcopy(self.original_module)
        # TODO(synk): accelerate hook re-wiring (_create_new_hook) is host-side
        # dispatch plumbing only; no Pallas equivalent.

    def enable_adapters(self, enabled: bool):
        if self._disable_adapters is not enabled:
            return
        self._disable_adapters = not enabled

    def set_adapter(self, adapter_name: str):
        if adapter_name not in self.modules_to_save:
            raise ValueError(
                f"Adapter {adapter_name} not found in {list(self.modules_to_save)}"
            )
        self._active_adapter = adapter_name

    def forward(self, *args, **kwargs):
        if self.disable_adapters or self.active_adapter not in self.modules_to_save:
            return self.original_module(*args, **kwargs)
        # The "cast args to adapter weight dtype" step is folded into the
        # Pallas kernel (tiles are cast on-chip), so args pass through as-is.
        return self.modules_to_save[self.active_adapter](*args, **kwargs)

    __call__ = forward


# --------------------------------- main ------------------------------------
if __name__ == "__main__":
    # Small shapes, deliberately NOT tile multiples (exercises padding path).
    batch, in_features, out_features = 24, 320, 384

    key = jax.random.PRNGKey(0)
    kx, kw, kb = jax.random.split(key, 3)

    # bf16 parameters: peak MXU throughput on v5e/v6e/v7x and half the HBM
    # traffic for the (large, in practice) classifier-head weight.
    weight = (
        jax.random.normal(kw, (out_features, in_features), jnp.float32) * 0.02
    ).astype(jnp.bfloat16)
    bias = (
        jax.random.normal(kb, (out_features,), jnp.float32) * 0.01
    ).astype(jnp.bfloat16)
    original = LinearParams(weight, bias)

    wrapper = ModulesToSaveWrapper(original, adapter_name="default")

    x = jax.random.normal(kx, (batch, in_features), jnp.float32)

    # Active-adapter path (normal forward).
    y = jax.block_until_ready(wrapper(x))
    assert y.dtype == weight.dtype

    # Reference: same math in plain JAX (bf16 inputs/weights, f32 accumulate).
    y_ref = (
        x.astype(jnp.bfloat16).astype(jnp.float32)
        @ weight.astype(jnp.float32).T
        + bias.astype(jnp.float32)
    )
    assert jnp.allclose(y.astype(jnp.float32), y_ref, atol=2e-2, rtol=2e-2)

    # Disabled-adapter path (falls back to original module; same kernel).
    wrapper.enable_adapters(False)
    y2 = jax.block_until_ready(wrapper(x))
    assert jnp.allclose(y2.astype(jnp.float32), y_ref, atol=2e-2, rtol=2e-2)

    # Re-enable + set_adapter round-trip.
    wrapper.enable_adapters(True)
    wrapper.set_adapter("default")
    y3 = jax.block_until_ready(wrapper(x))
    assert jnp.allclose(y3.astype(jnp.float32), y_ref, atol=2e-2, rtol=2e-2)

    print("KERNEL_OK")
</pallas_src>

<mosaic_0001>
module attributes {stable_mosaic.version = 11 : i64} {
  func.func @_linear_kernel(%arg0: i32, %arg1: i32, %arg2: i32, %arg3: memref<24x384xf32, #tpu.memory_space<vmem>>, %arg4: memref<384x384xbf16, #tpu.memory_space<vmem>>, %arg5: memref<1x384xbf16, #tpu.memory_space<vmem>>, %arg6: memref<24x384xbf16, #tpu.memory_space<vmem>>, %arg7: memref<24x384xf32, #tpu.memory_space<vmem>>) attributes {dimension_semantics = [#tpu.dimension_semantics<parallel>, #tpu.dimension_semantics<parallel>, #tpu.dimension_semantics<arbitrary>], iteration_bounds = array<i64: 1, 1, 1>, scalar_prefetch = 0 : i64, scratch_operands = 1 : i64, tpu.core_type = #tpu.core_type<tc>, window_params = [{transform_indices = @transform_0, window_bounds = array<i64: 24, 384>}, {transform_indices = @transform_1, window_bounds = array<i64: 384, 384>}, {transform_indices = @transform_2, window_bounds = array<i64: 1, 384>}, {transform_indices = @transform_3, window_bounds = array<i64: 24, 384>}]} {
    %c0_i32 = arith.constant 0 : i32
    %0 = arith.cmpi eq, %arg2, %c0_i32 : i32
    %1 = arith.extui %0 : i1 to i32
    %c0_i32_0 = arith.constant 0 : i32
    %2 = arith.cmpi ne, %1, %c0_i32_0 : i32
    scf.if %2 {
      %cst_10 = arith.constant 0.000000e+00 : f32
      %13 = vector.broadcast %cst_10 : f32 to vector<24x384xf32>
      %c0_11 = arith.constant 0 : index
      %c0_12 = arith.constant 0 : index
      %14 = vector.load %arg7[%c0_11, %c0_12] : memref<24x384xf32, #tpu.memory_space<vmem>>, vector<24x384xf32>
      tpu.vector_store %arg7[%c0_11, %c0_12], %13 {strides = array<i32>} : memref<24x384xf32, #tpu.memory_space<vmem>>, vector<24x384xf32>,
    } else {
    }
    %c0 = arith.constant 0 : index
    %c0_1 = arith.constant 0 : index
    %3 = vector.load %arg7[%c0, %c0_1] : memref<24x384xf32, #tpu.memory_space<vmem>>, vector<24x384xf32>
    %c0_2 = arith.constant 0 : index
    %c0_3 = arith.constant 0 : index
    %4 = vector.load %arg3[%c0_2, %c0_3] : memref<24x384xf32, #tpu.memory_space<vmem>>, vector<24x384xf32>
    %5 = arith.truncf %4 : vector<24x384xf32> to vector<24x384xbf16>
    %c0_4 = arith.constant 0 : index
    %c0_5 = arith.constant 0 : index
    %6 = vector.load %arg4[%c0_4, %c0_5] : memref<384x384xbf16, #tpu.memory_space<vmem>>, vector<384x384xbf16>
    %cst = arith.constant dense<0.000000e+00> : vector<24x384xf32>
    %7 = tpu.matmul %5, %6, %cst {dimension_numbers = #tpu.dot_dimension_numbers<[1], [0], [0], [1], [0, 0, 1, 1], [], []>} : vector<24x384xbf16>, vector<384x384xbf16>, vector<24x384xf32> -> vector<24x384xf32>
    %8 = arith.addf %3, %7 : vector<24x384xf32>
    %c0_6 = arith.constant 0 : index
    %c0_7 = arith.constant 0 : index
    %9 = vector.load %arg7[%c0_6, %c0_7] : memref<24x384xf32, #tpu.memory_space<vmem>>, vector<24x384xf32>
    tpu.vector_store %arg7[%c0_6, %c0_7], %8 {strides = array<i32>} : memref<24x384xf32, #tpu.memory_space<vmem>>, vector<24x384xf32>,
    %c0_i32_8 = arith.constant 0 : i32
    %10 = arith.cmpi eq, %arg2, %c0_i32_8 : i32
    %11 = arith.extui %10 : i1 to i32
    %c0_i32_9 = arith.constant 0 : i32
    %12 = arith.cmpi ne, %11, %c0_i32_9 : i32
    scf.if %12 {
      %c0_10 = arith.constant 0 : index
      %c0_11 = arith.constant 0 : index
      %13 = vector.load %arg7[%c0_10, %c0_11] : memref<24x384xf32, #tpu.memory_space<vmem>>, vector<24x384xf32>
      %c0_12 = arith.constant 0 : index
      %c0_13 = arith.constant 0 : index
      %14 = vector.load %arg5[%c0_12, %c0_13] : memref<1x384xbf16, #tpu.memory_space<vmem>>, vector<1x384xbf16>
      %15 = arith.extf %14 : vector<1x384xbf16> to vector<1x384xf32>
      %16 = vector.broadcast %15 : vector<1x384xf32> to vector<24x384xf32>
      %17 = arith.addf %13, %16 : vector<24x384xf32>
      %18 = arith.truncf %17 : vector<24x384xf32> to vector<24x384xbf16>
      %c0_14 = arith.constant 0 : index
      %c0_15 = arith.constant 0 : index
      %19 = vector.load %arg6[%c0_14, %c0_15] : memref<24x384xbf16, #tpu.memory_space<vmem>>, vector<24x384xbf16>
      tpu.vector_store %arg6[%c0_14, %c0_15], %18 {strides = array<i32>} : memref<24x384xbf16, #tpu.memory_space<vmem>>, vector<24x384xbf16>,
    } else {
    }
    return
  }
  func.func @transform_0(%arg0: i32, %arg1: i32, %arg2: i32) -> (i32, i32) {
    %c0_i32 = arith.constant 0 : i32
    return %arg1, %arg2 : i32, i32
  }
  func.func @transform_1(%arg0: i32, %arg1: i32, %arg2: i32) -> (i32, i32) {
    %c0_i32 = arith.constant 0 : i32
    return %arg2, %arg0 : i32, i32
  }
  func.func @transform_2(%arg0: i32, %arg1: i32, %arg2: i32) -> (i32, i32) {
    %c0_i32 = arith.constant 0 : i32
    %c0_i32_0 = arith.constant 0 : i32
    return %c0_i32, %arg0 : i32, i32
  }
  func.func @transform_3(%arg0: i32, %arg1: i32, %arg2: i32) -> (i32, i32) {
    %c0_i32 = arith.constant 0 : i32
    return %arg1, %arg0 : i32, i32
  }
}

</mosaic_0001>

<llo_original>
// kernel: _pallas_linear.1
$region0: #{_pallas_linear.1}
  #allocation0 [shape = 'u32[]', space=smem, size = 0x4, offset = 0x4, fixed_abs, tag = 'smem constant byte address 0x4 - core index']
  #allocation1 [shape = 'u32[144,128]{1,0:T(1,128)}', space=vmem, size = 0x12000, scoped, tag = 'internal scratch']
  #allocation2 [shape = 'f32[24,384]{1,0:T(8,128)}', space=vmem, size = 0x9000, scoped, tag = 'scratch operand']
  %s0 = inlined_call_operand.vmem [shape: f32[24,384], index: 0, kind: input, shape index: {}]
  %s1 = inlined_call_operand.vmem [shape: bf16[384,384], index: 1, kind: input, shape index: {}]
  %s2 = inlined_call_operand.vmem [shape: bf16[1,384], index: 2, kind: input, shape index: {}]
  %s3 = inlined_call_operand.hbm [shape: bf16[24,384], index: 3, kind: output, shape index: {}]
  %s4 = sld [smem:[#allocation0]]
  $region30: #{_pallas_linear.1} parent=0
    _
  %s6 = ssub.s32 1, %s4
  %s7 = scalar_select 0, %s6, %s4
  $region1: #{_pallas_linear.1} parent=0
    #allocation3 [shape = 'u8[18432]{0}', space=vmem, size = 0x4800, scoped, tag = 'output window, operand 0, single buffered']
    #allocation4 [shape = 's32[1]{0}', space=sflag, size = 0x4, scoped, tag = 'scoped memory for _pallas_linear.1']
    %8 = vsyncpa [#allocation4], 0
    // Predicated region
    $region2: #{_pallas_linear.1} parent=1 // pred_check
      _
    $region3: #{_pallas_linear.1} parent=1 // pred_check_branch
      %10 = sbr.rel (0) target = $region5
    $region4: #{_pallas_linear.1} parent=1 // pred_region
      _
    $region5: #{_pallas_linear.1} parent=1 // pred_fallthru
      _
    // Predicated region
    $region6: #{_pallas_linear.1} parent=1 // pred_check
      _
    $region7: #{_pallas_linear.1} parent=1 // pred_check_branch
      %12 = sbr.rel (0) target = $region9
    $region8: #{_pallas_linear.1} parent=1 // pred_region
      _
    $region9: #{_pallas_linear.1} parent=1 // pred_fallthru
      _
    // Predicated region
    $region10: #{_pallas_linear.1} parent=1 // pred_check
      _
    $region11: #{_pallas_linear.1} parent=1 // pred_check_branch
      %14 = sbr.rel (0) target = $region13
    $region12: #{_pallas_linear.1} parent=1 // pred_region
      _
    $region13: #{_pallas_linear.1} parent=1 // pred_fallthru
      _
    %p16 = scmp.eq.s32.totalorder 0, 0
    // Predicated region
    $region14: #{_pallas_linear.1} parent=1 // pred_check
      %p17 = pneg %p16
    $region15: #{_pallas_linear.1} parent=1 // pred_check_branch
      %19 = sbr.rel (%p17) target = $region17
    $region16: #{_pallas_linear.1} parent=1 // pred_region
      %20 = vst [vmem:[#allocation2] sm:$0xff] 0.0
      %21 = vst [vmem:[#allocation2 + $0x8] sm:$0xff] 0.0
      %22 = vst [vmem:[#allocation2 + $0x10] sm:$0xff] 0.0
      %23 = vst [vmem:[#allocation2 + $0x18] sm:$0xff] 0.0
      %24 = vst [vmem:[#allocation2 + $0x20] sm:$0xff] 0.0
      %25 = vst [vmem:[#allocation2 + $0x28] sm:$0xff] 0.0
      %26 = vst [vmem:[#allocation2 + $0x30] sm:$0xff] 0.0
      %27 = vst [vmem:[#allocation2 + $0x38] sm:$0xff] 0.0
      %28 = vst [vmem:[#allocation2 + $0x40] sm:$0xff] 0.0
    $region17: #{_pallas_linear.1} parent=1 // pred_fallthru
      _
    %v29 = vld [vmem:[#allocation2] sm:$0xff]
    %v30 = vld [vmem:[#allocation2 + $0x8] sm:$0xff]
    %v31 = vld [vmem:[#allocation2 + $0x10] sm:$0xff]
    %v32 = vld [vmem:[#allocation2 + $0x18] sm:$0xff]
    %v33 = vld [vmem:[#allocation2 + $0x20] sm:$0xff]
    %v34 = vld [vmem:[#allocation2 + $0x28] sm:$0xff]
    %v35 = vld [vmem:[#allocation2 + $0x30] sm:$0xff]
    %v36 = vld [vmem:[#allocation2 + $0x38] sm:$0xff]
    %v37 = vld [vmem:[#allocation2 + $0x40] sm:$0xff]
    %v38 = vld [vmem:[%s0] sm:$0xff]
    %v39 = vld [vmem:[%s0 + $0x8] sm:$0xff]
    %v40 = vld [vmem:[%s0 + $0x10] sm:$0xff]
    %v41 = vld [vmem:[%s0 + $0x18] sm:$0xff]
    %v42 = vld [vmem:[%s0 + $0x20] sm:$0xff]
    %v43 = vld [vmem:[%s0 + $0x28] sm:$0xff]
    %v44 = vld [vmem:[%s0 + $0x30] sm:$0xff]
    %v45 = vld [vmem:[%s0 + $0x38] sm:$0xff]
    %v46 = vld [vmem:[%s0 + $0x40] sm:$0xff]
    %v47 = vpack.c.bf16 %v41, %v38
    %v48 = vpack.c.bf16 %v42, %v39
    %v49 = vpack.c.bf16 %v43, %v40
    %v50 = vpack.c.bf16 %v44, %v44
    %v51 = vpack.c.bf16 %v45, %v45
    %v52 = vpack.c.bf16 %v46, %v46
    %v53 = vld [vmem:[%s1] sm:$0xff]
    %v54 = vld [vmem:[%s1 + $0x8] sm:$0xf]
    %v55 = vld [vmem:[%s1 + $0xc] sm:$0xff]
    %v56 = vld [vmem:[%s1 + $0x14] sm:$0xf]
    %v57 = vld [vmem:[%s1 + $0x18] sm:$0xff]
    %v58 = vld [vmem:[%s1 + $0x20] sm:$0xf]
    %v59 = vld [vmem:[%s1 + $0x24] sm:$0xff]
    %v60 = vld [vmem:[%s1 + $0x2c] sm:$0xf]
    %v61 = vld [vmem:[%s1 + $0x30] sm:$0xff]
    %v62 = vld [vmem:[%s1 + $0x38] sm:$0xf]
    %v63 = vld [vmem:[%s1 + $0x3c] sm:$0xff]
    %v64 = vld [vmem:[%s1 + $0x44] sm:$0xf]
    %v65 = vld [vmem:[%s1 + $0x48] sm:$0xff]
    %v66 = vld [vmem:[%s1 + $0x50] sm:$0xf]
    %v67 = vld [vmem:[%s1 + $0x54] sm:$0xff]
    %v68 = vld [vmem:[%s1 + $0x5c] sm:$0xf]
    %v69 = vld [vmem:[%s1 + $0x60] sm:$0xff]
    %v70 = vld [vmem:[%s1 + $0x68] sm:$0xf]
    %v71 = vld [vmem:[%s1 + $0x6c] sm:$0xff]
    %v72 = vld [vmem:[%s1 + $0x74] sm:$0xf]
    %v73 = vld [vmem:[%s1 + $0x78] sm:$0xff]
    %v74 = vld [vmem:[%s1 + $0x80] sm:$0xf]
    %v75 = vld [vmem:[%s1 + $0x84] sm:$0xff]
    %v76 = vld [vmem:[%s1 + $0x8c] sm:$0xf]
    %v77 = vld [vmem:[%s1 + $0x90] sm:$0xff]
    %v78 = vld [vmem:[%s1 + $0x98] sm:$0xf]
    %v79 = vld [vmem:[%s1 + $0x9c] sm:$0xff]
    %v80 = vld [vmem:[%s1 + $0xa4] sm:$0xf]
    %v81 = vld [vmem:[%s1 + $0xa8] sm:$0xff]
    %v82 = vld [vmem:[%s1 + $0xb0] sm:$0xf]
    %v83 = vld [vmem:[%s1 + $0xb4] sm:$0xff]
    %v84 = vld [vmem:[%s1 + $0xbc] sm:$0xf]
    %v85 = vld [vmem:[%s1 + $0xc0] sm:$0xff]
    %v86 = vld [vmem:[%s1 + $0xc8] sm:$0xf]
    %v87 = vld [vmem:[%s1 + $0xcc] sm:$0xff]
    %v88 = vld [vmem:[%s1 + $0xd4] sm:$0xf]
    %v89 = vld [vmem:[%s1 + $0xd8] sm:$0xff]
    %v90 = vld [vmem:[%s1 + $0xe0] sm:$0xf]
    %v91 = vld [vmem:[%s1 + $0xe4] sm:$0xff]
    %v92 = vld [vmem:[%s1 + $0xec] sm:$0xf]
    %v93 = vld [vmem:[%s1 + $0xf0] sm:$0xff]
    %v94 = vld [vmem:[%s1 + $0xf8] sm:$0xf]
    %v95 = vld [vmem:[%s1 + $0xfc] sm:$0xff]
    %v96 = vld [vmem:[%s1 + $0x104] sm:$0xf]
    %v97 = vld [vmem:[%s1 + $0x108] sm:$0xff]
    %v98 = vld [vmem:[%s1 + $0x110] sm:$0xf]
    %v99 = vld [vmem:[%s1 + $0x114] sm:$0xff]
    %v100 = vld [vmem:[%s1 + $0x11c] sm:$0xf]
    %v101 = vld [vmem:[%s1 + $0x120] sm:$0xff]
    %v102 = vld [vmem:[%s1 + $0x128] sm:$0xf]
    %v103 = vld [vmem:[%s1 + $0x12c] sm:$0xff]
    %v104 = vld [vmem:[%s1 + $0x134] sm:$0xf]
    %v105 = vld [vmem:[%s1 + $0x138] sm:$0xff]
    %v106 = vld [vmem:[%s1 + $0x140] sm:$0xf]
    %v107 = vld [vmem:[%s1 + $0x144] sm:$0xff]
    %v108 = vld [vmem:[%s1 + $0x14c] sm:$0xf]
    %v109 = vld [vmem:[%s1 + $0x150] sm:$0xff]
    %v110 = vld [vmem:[%s1 + $0x158] sm:$0xf]
    %v111 = vld [vmem:[%s1 + $0x15c] sm:$0xff]
    %v112 = vld [vmem:[%s1 + $0x164] sm:$0xf]
    %v113 = vld [vmem:[%s1 + $0x168] sm:$0xff]
    %v114 = vld [vmem:[%s1 + $0x170] sm:$0xf]
    %v115 = vld [vmem:[%s1 + $0x174] sm:$0xff]
    %v116 = vld [vmem:[%s1 + $0x17c] sm:$0xf]
    %v117 = vld [vmem:[%s1 + $0x180] sm:$0xff]
    %v118 = vld [vmem:[%s1 + $0x188] sm:$0xf]
    %v119 = vld [vmem:[%s1 + $0x18c] sm:$0xff]
    %v120 = vld [vmem:[%s1 + $0x194] sm:$0xf]
    %v121 = vld [vmem:[%s1 + $0x198] sm:$0xff]
    %v122 = vld [vmem:[%s1 + $0x1a0] sm:$0xf]
    %v123 = vld [vmem:[%s1 + $0x1a4] sm:$0xff]
    %v124 = vld [vmem:[%s1 + $0x1ac] sm:$0xf]
    %v125 = vld [vmem:[%s1 + $0x1b0] sm:$0xff]
    %v126 = vld [vmem:[%s1 + $0x1b8] sm:$0xf]
    %v127 = vld [vmem:[%s1 + $0x1bc] sm:$0xff]
    %v128 = vld [vmem:[%s1 + $0x1c4] sm:$0xf]
    %v129 = vld [vmem:[%s1 + $0x1c8] sm:$0xff]
    %v130 = vld [vmem:[%s1 + $0x1d0] sm:$0xf]
    %v131 = vld [vmem:[%s1 + $0x1d4] sm:$0xff]
    %v132 = vld [vmem:[%s1 + $0x1dc] sm:$0xf]
    %v133 = vld [vmem:[%s1 + $0x1e0] sm:$0xff]
    %v134 = vld [vmem:[%s1 + $0x1e8] sm:$0xf]
    %v135 = vld [vmem:[%s1 + $0x1ec] sm:$0xff]
    %v136 = vld [vmem:[%s1 + $0x1f4] sm:$0xf]
    %v137 = vld [vmem:[%s1 + $0x1f8] sm:$0xff]
    %v138 = vld [vmem:[%s1 + $0x200] sm:$0xf]
    %v139 = vld [vmem:[%s1 + $0x204] sm:$0xff]
    %v140 = vld [vmem:[%s1 + $0x20c] sm:$0xf]
    %v141 = vld [vmem:[%s1 + $0x210] sm:$0xff]
    %v142 = vld [vmem:[%s1 + $0x218] sm:$0xf]
    %v143 = vld [vmem:[%s1 + $0x21c] sm:$0xff]
    %v144 = vld [vmem:[%s1 + $0x224] sm:$0xf]
    %v145 = vld [vmem:[%s1 + $0x228] sm:$0xff]
    %v146 = vld [vmem:[%s1 + $0x230] sm:$0xf]
    %v147 = vld [vmem:[%s1 + $0x234] sm:$0xff]
    %v148 = vld [vmem:[%s1 + $0x23c] sm:$0xf]
    %v245 = vunpack.c.l.b16 %v53
    %v246 = vunpack.c.h.b16 %v53
    %v247 = vunpack.c.l.b16 %v54
    %v248 = vunpack.c.l.b16 %v55
    %v249 = vunpack.c.h.b16 %v55
    %v250 = vunpack.c.l.b16 %v56
    %v251 = vunpack.c.l.b16 %v57
    %v252 = vunpack.c.h.b16 %v57
    %v253 = vunpack.c.l.b16 %v58
    %v254 = vunpack.c.l.b16 %v59
    %v255 = vunpack.c.h.b16 %v59
    %v256 = vunpack.c.l.b16 %v60
    %v257 = vunpack.c.l.b16 %v61
    %v258 = vunpack.c.h.b16 %v61
    %v259 = vunpack.c.l.b16 %v62
    %v260 = vunpack.c.l.b16 %v63
    %v261 = vunpack.c.h.b16 %v63
    %v262 = vunpack.c.l.b16 %v64
    %v263 = vunpack.c.l.b16 %v65
    %v264 = vunpack.c.h.b16 %v65
    %v265 = vunpack.c.l.b16 %v66
    %v266 = vunpack.c.l.b16 %v67
    %v267 = vunpack.c.h.b16 %v67
    %v268 = vunpack.c.l.b16 %v68
    %v269 = vunpack.c.l.b16 %v69
    %v270 = vunpack.c.h.b16 %v69
    %v271 = vunpack.c.l.b16 %v70
    %v272 = vunpack.c.l.b16 %v71
    %v273 = vunpack.c.h.b16 %v71
    %v274 = vunpack.c.l.b16 %v72
    %v275 = vunpack.c.l.b16 %v73
    %v276 = vunpack.c.h.b16 %v73
    %v277 = vunpack.c.l.b16 %v74
    %v278 = vunpack.c.l.b16 %v75
    %v279 = vunpack.c.h.b16 %v75
    %v280 = vunpack.c.l.b16 %v76
    %v281 = vunpack.c.l.b16 %v77
    %v282 = vunpack.c.h.b16 %v77
    %v283 = vunpack.c.l.b16 %v78
    %v284 = vunpack.c.l.b16 %v79
    %v285 = vunpack.c.h.b16 %v79
    %v286 = vunpack.c.l.b16 %v80
    %v287 = vunpack.c.l.b16 %v81
    %v288 = vunpack.c.h.b16 %v81
    %v289 = vunpack.c.l.b16 %v82
    %v290 = vunpack.c.l.b16 %v83
    %v291 = vunpack.c.h.b16 %v83
    %v292 = vunpack.c.l.b16 %v84
    %v293 = vunpack.c.l.b16 %v85
    %v294 = vunpack.c.h.b16 %v85
    %v295 = vunpack.c.l.b16 %v86
    %v296 = vunpack.c.l.b16 %v87
    %v297 = vunpack.c.h.b16 %v87
    %v298 = vunpack.c.l.b16 %v88
    %v299 = vunpack.c.l.b16 %v89
    %v300 = vunpack.c.h.b16 %v89
    %v301 = vunpack.c.l.b16 %v90
    %v302 = vunpack.c.l.b16 %v91
    %v303 = vunpack.c.h.b16 %v91
    %v304 = vunpack.c.l.b16 %v92
    %v305 = vunpack.c.l.b16 %v93
    %v306 = vunpack.c.h.b16 %v93
    %v307 = vunpack.c.l.b16 %v94
    %v308 = vunpack.c.l.b16 %v95
    %v309 = vunpack.c.h.b16 %v95
    %v310 = vunpack.c.l.b16 %v96
    %v311 = vunpack.c.l.b16 %v97
    %v312 = vunpack.c.h.b16 %v97
    %v313 = vunpack.c.l.b16 %v98
    %v314 = vunpack.c.l.b16 %v99
    %v315 = vunpack.c.h.b16 %v99
    %v316 = vunpack.c.l.b16 %v100
    %v317 = vunpack.c.l.b16 %v101
    %v318 = vunpack.c.h.b16 %v101
    %v319 = vunpack.c.l.b16 %v102
    %v320 = vunpack.c.l.b16 %v103
    %v321 = vunpack.c.h.b16 %v103
    %v322 = vunpack.c.l.b16 %v104
    %v323 = vunpack.c.l.b16 %v105
    %v324 = vunpack.c.h.b16 %v105
    %v325 = vunpack.c.l.b16 %v106
    %v326 = vunpack.c.l.b16 %v107
    %v327 = vunpack.c.h.b16 %v107
    %v328 = vunpack.c.l.b16 %v108
    %v329 = vunpack.c.l.b16 %v109
    %v330 = vunpack.c.h.b16 %v109
    %v331 = vunpack.c.l.b16 %v110
    %v332 = vunpack.c.l.b16 %v111
    %v333 = vunpack.c.h.b16 %v111
    %v334 = vunpack.c.l.b16 %v112
    %v335 = vunpack.c.l.b16 %v113
    %v336 = vunpack.c.h.b16 %v113
    %v337 = vunpack.c.l.b16 %v114
    %v338 = vunpack.c.l.b16 %v115
    %v339 = vunpack.c.h.b16 %v115
    %v340 = vunpack.c.l.b16 %v116
    %v341 = vunpack.c.l.b16 %v117
    %v342 = vunpack.c.h.b16 %v117
    %v343 = vunpack.c.l.b16 %v118
    %v344 = vunpack.c.l.b16 %v119
    %v345 = vunpack.c.h.b16 %v119
    %v346 = vunpack.c.l.b16 %v120
    %v347 = vunpack.c.l.b16 %v121
    %v348 = vunpack.c.h.b16 %v121
    %v349 = vunpack.c.l.b16 %v122
    %v350 = vunpack.c.l.b16 %v123
    %v351 = vunpack.c.h.b16 %v123
    %v352 = vunpack.c.l.b16 %v124
    %v353 = vunpack.c.l.b16 %v125
    %v354 = vunpack.c.h.b16 %v125
    %v355 = vunpack.c.l.b16 %v126
    %v356 = vunpack.c.l.b16 %v127
    %v357 = vunpack.c.h.b16 %v127
    %v358 = vunpack.c.l.b16 %v128
    %v359 = vunpack.c.l.b16 %v129
    %v360 = vunpack.c.h.b16 %v129
    %v361 = vunpack.c.l.b16 %v130
    %v362 = vunpack.c.l.b16 %v131
    %v363 = vunpack.c.h.b16 %v131
    %v364 = vunpack.c.l.b16 %v132
    %v365 = vunpack.c.l.b16 %v133
    %v366 = vunpack.c.h.b16 %v133
    %v367 = vunpack.c.l.b16 %v134
    %v368 = vunpack.c.l.b16 %v135
    %v369 = vunpack.c.h.b16 %v135
    %v370 = vunpack.c.l.b16 %v136
    %v371 = vunpack.c.l.b16 %v137
    %v372 = vunpack.c.h.b16 %v137
    %v373 = vunpack.c.l.b16 %v138
    %v374 = vunpack.c.l.b16 %v139
    %v375 = vunpack.c.h.b16 %v139
    %v376 = vunpack.c.l.b16 %v140
    %v377 = vunpack.c.l.b16 %v141
    %v378 = vunpack.c.h.b16 %v141
    %v379 = vunpack.c.l.b16 %v142
    %v380 = vunpack.c.l.b16 %v143
    %v381 = vunpack.c.h.b16 %v143
    %v382 = vunpack.c.l.b16 %v144
    %v383 = vunpack.c.l.b16 %v145
    %v384 = vunpack.c.h.b16 %v145
    %v385 = vunpack.c.l.b16 %v146
    %v386 = vunpack.c.l.b16 %v147
    %v387 = vunpack.c.h.b16 %v147
    %v388 = vunpack.c.l.b16 %v148
    %v389 = vpack.c.b16 %v248, %v245
    %v390 = vpack.c.b16 %v249, %v246
    %v391 = vpack.c.b16 %v250, %v247
    %v392 = vpack.c.b16 %v254, %v251
    %v393 = vpack.c.b16 %v255, %v252
    %v394 = vpack.c.b16 %v256, %v253
    %v395 = vpack.c.b16 %v260, %v257
    %v396 = vpack.c.b16 %v261, %v258
    %v397 = vpack.c.b16 %v262, %v259
    %v398 = vpack.c.b16 %v266, %v263
    %v399 = vpack.c.b16 %v267, %v264
    %v400 = vpack.c.b16 %v268, %v265
    %v401 = vpack.c.b16 %v272, %v269
    %v402 = vpack.c.b16 %v273, %v270
    %v403 = vpack.c.b16 %v274, %v271
    %v404 = vpack.c.b16 %v278, %v275
    %v405 = vpack.c.b16 %v279, %v276
    %v406 = vpack.c.b16 %v280, %v277
    %v407 = vpack.c.b16 %v284, %v281
    %v408 = vpack.c.b16 %v285, %v282
    %v409 = vpack.c.b16 %v286, %v283
    %v410 = vpack.c.b16 %v290, %v287
    %v411 = vpack.c.b16 %v291, %v288
    %v412 = vpack.c.b16 %v292, %v289
    %v413 = vpack.c.b16 %v296, %v293
    %v414 = vpack.c.b16 %v297, %v294
    %v415 = vpack.c.b16 %v298, %v295
    %v416 = vpack.c.b16 %v302, %v299
    %v417 = vpack.c.b16 %v303, %v300
    %v418 = vpack.c.b16 %v304, %v301
    %v419 = vpack.c.b16 %v308, %v305
    %v420 = vpack.c.b16 %v309, %v306
    %v421 = vpack.c.b16 %v310, %v307
    %v422 = vpack.c.b16 %v314, %v311
    %v423 = vpack.c.b16 %v315, %v312
    %v424 = vpack.c.b16 %v316, %v313
    %v425 = vpack.c.b16 %v320, %v317
    %v426 = vpack.c.b16 %v321, %v318
    %v427 = vpack.c.b16 %v322, %v319
    %v428 = vpack.c.b16 %v326, %v323
    %v429 = vpack.c.b16 %v327, %v324
    %v430 = vpack.c.b16 %v328, %v325
    %v431 = vpack.c.b16 %v332, %v329
    %v432 = vpack.c.b16 %v333, %v330
    %v433 = vpack.c.b16 %v334, %v331
    %v434 = vpack.c.b16 %v338, %v335
    %v435 = vpack.c.b16 %v339, %v336
    %v436 = vpack.c.b16 %v340, %v337
    %v437 = vpack.c.b16 %v344, %v341
    %v438 = vpack.c.b16 %v345, %v342
    %v439 = vpack.c.b16 %v346, %v343
    %v440 = vpack.c.b16 %v350, %v347
    %v441 = vpack.c.b16 %v351, %v348
    %v442 = vpack.c.b16 %v352, %v349
    %v443 = vpack.c.b16 %v356, %v353
    %v444 = vpack.c.b16 %v357, %v354
    %v445 = vpack.c.b16 %v358, %v355
    %v446 = vpack.c.b16 %v362, %v359
    %v447 = vpack.c.b16 %v363, %v360
    %v448 = vpack.c.b16 %v364, %v361
    %v449 = vpack.c.b16 %v368, %v365
    %v450 = vpack.c.b16 %v369, %v366
    %v451 = vpack.c.b16 %v370, %v367
    %v452 = vpack.c.b16 %v374, %v371
    %v453 = vpack.c.b16 %v375, %v372
    %v454 = vpack.c.b16 %v376, %v373
    %v455 = vpack.c.b16 %v380, %v377
    %v456 = vpack.c.b16 %v381, %v378
    %v457 = vpack.c.b16 %v382, %v379
    %v458 = vpack.c.b16 %v386, %v383
    %v459 = vpack.c.b16 %v387, %v384
    %v460 = vpack.c.b16 %v388, %v385
    %533 = vmatprep.subr.bf16.mxu0 %v411
    %534 = vmatpush1.bf16.msra.mxu0 %v410
    %535 = vmatprep.subr.bf16.mxu0 %v408
    %536 = vmatpush1.bf16.msra.mxu0 %v407
    %537 = vmatprep.subr.bf16.mxu0 %v405
    %538 = vmatpush1.bf16.msra.mxu0 %v404
    %539 = vmatprep.subr.bf16.mxu0 %v402
    %540 = vmatpush1.bf16.msra.mxu0 %v401
    %541 = vmatprep.subr.bf16.mxu0 %v399
    %542 = vmatpush1.bf16.msra.mxu0 %v398
    %543 = vmatprep.subr.bf16.mxu0 %v396
    %544 = vmatpush1.bf16.msra.mxu0 %v395
    %545 = vmatprep.subr.bf16.mxu0 %v393
    %546 = vmatpush1.bf16.msra.mxu0 %v392
    %547 = vmatprep.subr.bf16.mxu0 %v390
    %548 = vmatpush1.bf16.msra.mxu0 %v389
    %549 = vmatprep.subr.bf16.mxu0 %v435
    %550 = vmatpush2.bf16.msra.mxu0 %v434
    %551 = vmatprep.subr.bf16.mxu0 %v432
    %552 = vmatpush2.bf16.msra.mxu0 %v431
    %553 = vmatprep.subr.bf16.mxu0 %v429
    %554 = vmatpush2.bf16.msra.mxu0 %v428
    %555 = vmatprep.subr.bf16.mxu0 %v426
    %556 = vmatpush2.bf16.msra.mxu0 %v425
    %557 = vmatprep.subr.bf16.mxu0 %v423
    %558 = vmatpush2.bf16.msra.mxu0 %v422
    %559 = vmatprep.subr.bf16.mxu0 %v420
    %560 = vmatpush2.bf16.msra.mxu0 %v419
    %561 = vmatprep.subr.bf16.mxu0 %v417
    %562 = vmatpush2.bf16.msra.mxu0 %v416
    %563 = vmatprep.subr.bf16.mxu0 %v414
    %564 = vmatpush2.bf16.msra.mxu0 %v413
    %565 = vmatprep.mubr.bf16.mxu0 %v48
    %566 = vmatmul.mubr.bf16.gmra.mxu0 %v47
    %v567 = vpop.f32.mrf.mxu0
    %v568 = vadd.f32 0.0, %v567
    %v569 = vpop.f32.mrf.mxu0
    %v570 = vadd.f32 0.0, %v569
    %v571 = vpop.f32.mrf.mxu0
    %v572 = vadd.f32 0.0, %v571
    %v573 = vpop.f32.mrf.mxu0
    %v574 = vadd.f32 0.0, %v573
    %575 = vmatprep.mubr.bf16.mxu0 %v51
    %576 = vmatmul.mubr.bf16.gmra.mxu0 %v50
    %v577 = vpop.f32.mrf.mxu0
    %v578 = vadd.f32 0.0, %v577
    %v579 = vpop.f32.mrf.mxu0
    %v580 = vadd.f32 0.0, %v579
    %v581 = vpop.f32.mrf.mxu0
    %v582 = vpop.f32.mrf.mxu0
    %583 = vdwg.mxu0
    %584 = vmatprep.subr.bf16.mxu0 %v459
    %585 = vmatpush1.bf16.msra.mxu0 %v458
    %586 = vmatprep.subr.bf16.mxu0 %v456
    %587 = vmatpush1.bf16.msra.mxu0 %v455
    %588 = vmatprep.subr.bf16.mxu0 %v453
    %589 = vmatpush1.bf16.msra.mxu0 %v452
    %590 = vmatprep.subr.bf16.mxu0 %v450
    %591 = vmatpush1.bf16.msra.mxu0 %v449
    %592 = vmatprep.subr.bf16.mxu0 %v447
    %593 = vmatpush1.bf16.msra.mxu0 %v446
    %594 = vmatprep.subr.bf16.mxu0 %v444
    %595 = vmatpush1.bf16.msra.mxu0 %v443
    %596 = vmatprep.subr.bf16.mxu0 %v441
    %597 = vmatpush1.bf16.msra.mxu0 %v440
    %598 = vmatprep.subr.bf16.mxu0 %v438
    %599 = vmatpush1.bf16.msra.mxu0 %v437
    %600 = vmatprep.subr.bf16.mxu0 0
    %601 = vmatpush2.bf16.msra.mxu0 0
    %602 = vmatprep.subr.bf16.mxu0 0
    %603 = vmatpush2.bf16.msra.mxu0 0
    %604 = vmatprep.subr.bf16.mxu0 0
    %605 = vmatpush2.bf16.msra.mxu0 0
    %606 = vmatprep.subr.bf16.mxu0 0
    %607 = vmatpush2.bf16.msra.mxu0 0
    %608 = vmatprep.subr.bf16.mxu0 0
    %609 = vmatpush2.bf16.msra.mxu0 0
    %610 = vmatprep.subr.bf16.mxu0 0
    %611 = vmatpush2.bf16.msra.mxu0 0
    %612 = vmatprep.subr.bf16.mxu0 0
    %613 = vmatpush2.bf16.msra.mxu0 0
    %614 = vmatprep.subr.bf16.mxu0 0
    %615 = vmatpush2.bf16.msra.mxu0 0
    %616 = vmatprep.mubr.bf16.mxu0 0
    %617 = vmatmul.mubr.bf16.gmra.mxu0 %v49
    %v618 = vpop.f32.mrf.mxu0
    %v619 = vadd.f32 %v568, %v618
    %v620 = vpop.f32.mrf.mxu0
    %v621 = vadd.f32 %v570, %v620
    %v622 = vpop.f32.mrf.mxu0
    %v623 = vadd.f32 %v572, %v622
    %v624 = vpop.f32.mrf.mxu0
    %v625 = vadd.f32 %v574, %v624
    %626 = vmatprep.mubr.bf16.mxu0 0
    %627 = vmatmul.mubr.bf16.gmra.mxu0 %v52
    %v628 = vpop.f32.mrf.mxu0
    %v629 = vadd.f32 %v578, %v628
    %v630 = vpop.f32.mrf.mxu0
    %v631 = vadd.f32 %v580, %v630
    %v632 = vpop.f32.mrf.mxu0
    %v633 = vpop.f32.mrf.mxu0
    %634 = vdwg.mxu0
    %635 = vmatprep.subr.bf16.mxu0 0
    %636 = vmatpush1.bf16.msra.mxu0 %v412
    %637 = vmatprep.subr.bf16.mxu0 0
    %638 = vmatpush1.bf16.msra.mxu0 %v409
    %639 = vmatprep.subr.bf16.mxu0 0
    %640 = vmatpush1.bf16.msra.mxu0 %v406
    %641 = vmatprep.subr.bf16.mxu0 0
    %642 = vmatpush1.bf16.msra.mxu0 %v403
    %643 = vmatprep.subr.bf16.mxu0 0
    %644 = vmatpush1.bf16.msra.mxu0 %v400
    %645 = vmatprep.subr.bf16.mxu0 0
    %646 = vmatpush1.bf16.msra.mxu0 %v397
    %647 = vmatprep.subr.bf16.mxu0 0
    %648 = vmatpush1.bf16.msra.mxu0 %v394
    %649 = vmatprep.subr.bf16.mxu0 0
    %650 = vmatpush1.bf16.msra.mxu0 %v391
    %651 = vmatprep.subr.bf16.mxu0 0
    %652 = vmatpush2.bf16.msra.mxu0 %v436
    %653 = vmatprep.subr.bf16.mxu0 0
    %654 = vmatpush2.bf16.msra.mxu0 %v433
    %655 = vmatprep.subr.bf16.mxu0 0
    %656 = vmatpush2.bf16.msra.mxu0 %v430
    %657 = vmatprep.subr.bf16.mxu0 0
    %658 = vmatpush2.bf16.msra.mxu0 %v427
    %659 = vmatprep.subr.bf16.mxu0 0
    %660 = vmatpush2.bf16.msra.mxu0 %v424
    %661 = vmatprep.subr.bf16.mxu0 0
    %662 = vmatpush2.bf16.msra.mxu0 %v421
    %663 = vmatprep.subr.bf16.mxu0 0
    %664 = vmatpush2.bf16.msra.mxu0 %v418
    %665 = vmatprep.subr.bf16.mxu0 0
    %666 = vmatpush2.bf16.msra.mxu0 %v415
    %667 = vmatprep.mubr.bf16.mxu0 %v48
    %668 = vmatmul.mubr.bf16.gmra.mxu0 %v47
    %v669 = vpop.f32.mrf.mxu0
    %v670 = vadd.f32 0.0, %v669
    %v671 = vpop.f32.mrf.mxu0
    %v672 = vpop.f32.mrf.mxu0
    %v673 = vadd.f32 0.0, %v672
    %v674 = vpop.f32.mrf.mxu0
    %675 = vmatprep.mubr.bf16.mxu0 %v51
    %676 = vmatmul.mubr.bf16.gmra.mxu0 %v50
    %v677 = vpop.f32.mrf.mxu0
    %v678 = vadd.f32 0.0, %v677
    %v679 = vpop.f32.mrf.mxu0
    %v680 = vpop.f32.mrf.mxu0
    %v681 = vpop.f32.mrf.mxu0
    %682 = vdwg.mxu0
    %683 = vmatprep.subr.bf16.mxu0 0
    %684 = vmatpush1.bf16.msra.mxu0 %v460
    %685 = vmatprep.subr.bf16.mxu0 0
    %686 = vmatpush1.bf16.msra.mxu0 %v457
    %687 = vmatprep.subr.bf16.mxu0 0
    %688 = vmatpush1.bf16.msra.mxu0 %v454
    %689 = vmatprep.subr.bf16.mxu0 0
    %690 = vmatpush1.bf16.msra.mxu0 %v451
    %691 = vmatprep.subr.bf16.mxu0 0
    %692 = vmatpush1.bf16.msra.mxu0 %v448
    %693 = vmatprep.subr.bf16.mxu0 0
    %694 = vmatpush1.bf16.msra.mxu0 %v445
    %695 = vmatprep.subr.bf16.mxu0 0
    %696 = vmatpush1.bf16.msra.mxu0 %v442
    %697 = vmatprep.subr.bf16.mxu0 0
    %698 = vmatpush1.bf16.msra.mxu0 %v439
    %699 = vmatprep.subr.bf16.mxu0 0
    %700 = vmatpush2.bf16.msra.mxu0 0
    %701 = vmatprep.subr.bf16.mxu0 0
    %702 = vmatpush2.bf16.msra.mxu0 0
    %703 = vmatprep.subr.bf16.mxu0 0
    %704 = vmatpush2.bf16.msra.mxu0 0
    %705 = vmatprep.subr.bf16.mxu0 0
    %706 = vmatpush2.bf16.msra.mxu0 0
    %707 = vmatprep.subr.bf16.mxu0 0
    %708 = vmatpush2.bf16.msra.mxu0 0
    %709 = vmatprep.subr.bf16.mxu0 0
    %710 = vmatpush2.bf16.msra.mxu0 0
    %711 = vmatprep.subr.bf16.mxu0 0
    %712 = vmatpush2.bf16.msra.mxu0 0
    %713 = vmatprep.subr.bf16.mxu0 0
    %714 = vmatpush2.bf16.msra.mxu0 0
    %715 = vmatprep.mubr.bf16.mxu0 0
    %716 = vmatmul.mubr.bf16.gmra.mxu0 %v49
    %v717 = vpop.f32.mrf.mxu0
    %v718 = vadd.f32 %v670, %v717
    %v719 = vpop.f32.mrf.mxu0
    %v720 = vpop.f32.mrf.mxu0
    %v721 = vadd.f32 %v673, %v720
    %v722 = vpop.f32.mrf.mxu0
    %723 = vmatprep.mubr.bf16.mxu0 0
    %724 = vmatmul.mubr.bf16.gmra.mxu0 %v52
    %v725 = vpop.f32.mrf.mxu0
    %v726 = vadd.f32 %v678, %v725
    %v727 = vpop.f32.mrf.mxu0
    %v728 = vpop.f32.mrf.mxu0
    %v729 = vpop.f32.mrf.mxu0
    %730 = vdwg.mxu0
    %v731 = vadd.f32 %v29, %v619
    %v732 = vadd.f32 %v30, %v621
    %v733 = vadd.f32 %v31, %v718
    %v734 = vadd.f32 %v32, %v623
    %v735 = vadd.f32 %v33, %v625
    %v736 = vadd.f32 %v34, %v721
    %v737 = vadd.f32 %v35, %v629
    %v738 = vadd.f32 %v36, %v631
    %v739 = vadd.f32 %v37, %v726
    %740 = vst [vmem:[#allocation2] sm:$0xff] %v731
    %741 = vst [vmem:[#allocation2 + $0x8] sm:$0xff] %v732
    %742 = vst [vmem:[#allocation2 + $0x10] sm:$0xff] %v733
    %743 = vst [vmem:[#allocation2 + $0x18] sm:$0xff] %v734
    %744 = vst [vmem:[#allocation2 + $0x20] sm:$0xff] %v735
    %745 = vst [vmem:[#allocation2 + $0x28] sm:$0xff] %v736
    %746 = vst [vmem:[#allocation2 + $0x30] sm:$0xff] %v737
    %747 = vst [vmem:[#allocation2 + $0x38] sm:$0xff] %v738
    %748 = vst [vmem:[#allocation2 + $0x40] sm:$0xff] %v739
    // Predicated region
    $region18: #{_pallas_linear.1} parent=1 // pred_check
      %p749 = pneg %p16
    $region19: #{_pallas_linear.1} parent=1 // pred_check_branch
      %751 = sbr.rel (%p749) target = $region21
    $region20: #{_pallas_linear.1} parent=1 // pred_region
      %v752 = vld [vmem:[#allocation2] sm:$0xff]
      %v753 = vld [vmem:[#allocation2 + $0x8] sm:$0xff]
      %v754 = vld [vmem:[#allocation2 + $0x10] sm:$0xff]
      %v755 = vld [vmem:[#allocation2 + $0x18] sm:$0xff]
      %v756 = vld [vmem:[#allocation2 + $0x20] sm:$0xff]
      %v757 = vld [vmem:[#allocation2 + $0x28] sm:$0xff]
      %v758 = vld [vmem:[#allocation2 + $0x30] sm:$0xff]
      %v759 = vld [vmem:[#allocation2 + $0x38] sm:$0xff]
      %v760 = vld [vmem:[#allocation2 + $0x40] sm:$0xff]
      %v761 = vld [vmem:[%s2] sm:$0x7]
      %v762 = vunpack.c.l.bf16 %v761
      %v764 = vlaneseq
      %v765 = vshrl.u32 %v764, 7
      %v766 = vsub.s32 0, %v765
      %v767 = vrot.slane %v762, %v766
      %v768 = vlaneseq
      %v769 = vshrl.u32 %v768, 7
      %v770 = vsub.s32 2, %v769
      %v771 = vrot.slane %v762, %v770
      %v772 = vlaneseq
      %v773 = vshrl.u32 %v772, 7
      %v774 = vsub.s32 4, %v773
      %v775 = vrot.slane %v762, %v774
      %v779 = vlaneseq
      %v780 = vshrl.u32 %v779, 7
      %v781 = vsub.s32 0, %v780
      %v782 = vrot.slane %v767, %v781
      %v783 = vlaneseq
      %v784 = vshrl.u32 %v783, 7
      %v785 = vsub.s32 0, %v784
      %v786 = vrot.slane %v771, %v785
      %v787 = vlaneseq
      %v788 = vshrl.u32 %v787, 7
      %v789 = vsub.s32 0, %v788
      %v790 = vrot.slane %v775, %v789
      %v791 = vadd.f32 %v752, %v782
      %v792 = vadd.f32 %v753, %v786
      %v793 = vadd.f32 %v754, %v790
      %v794 = vadd.f32 %v755, %v782
      %v795 = vadd.f32 %v756, %v786
      %v796 = vadd.f32 %v757, %v790
      %v797 = vadd.f32 %v758, %v782
      %v798 = vadd.f32 %v759, %v786
      %v799 = vadd.f32 %v760, %v790
      %v800 = vpack.c.bf16 %v794, %v791
      %v801 = vpack.c.bf16 %v795, %v792
      %v802 = vpack.c.bf16 %v796, %v793
      %v803 = vpack.c.bf16 %v797, %v797
      %v804 = vpack.c.bf16 %v798, %v798
      %v805 = vpack.c.bf16 %v799, %v799
      %v812 = vunpack.c.l.b16 %v800
      %v813 = vunpack.c.l.b16 %v801
      %v814 = vunpack.c.l.b16 %v802
      %v815 = vunpack.c.h.b16 %v800
      %v816 = vunpack.c.h.b16 %v801
      %v817 = vunpack.c.h.b16 %v802
      %v818 = vunpack.c.l.b16 %v803
      %v819 = vunpack.c.l.b16 %v804
      %v820 = vunpack.c.l.b16 %v805
      %v821 = vpack.c.b16 %v813, %v812
      %v822 = vpack.c.b16 %v814, %v814
      %v823 = vpack.c.b16 %v816, %v815
      %v824 = vpack.c.b16 %v817, %v817
      %v825 = vpack.c.b16 %v819, %v818
      %v826 = vpack.c.b16 %v820, %v820
      %833 = vst [vmem:[#allocation3] sm:$0xff] %v821
      %834 = vst [vmem:[#allocation3 + $0x8] sm:$0xf] %v822
      %835 = vst [vmem:[#allocation3 + $0xc] sm:$0xff] %v823
      %836 = vst [vmem:[#allocation3 + $0x14] sm:$0xf] %v824
      %837 = vst [vmem:[#allocation3 + $0x18] sm:$0xff] %v825
      %838 = vst [vmem:[#allocation3 + $0x20] sm:$0xf] %v826
    $region21: #{_pallas_linear.1} parent=1 // pred_fallthru
      _
    // Predicated region
    $region22: #{_pallas_linear.1} parent=1 // pred_check
      _
    $region23: #{_pallas_linear.1} parent=1 // pred_check_branch
      %840 = sbr.rel (0) target = $region25
    $region24: #{_pallas_linear.1} parent=1 // pred_region
      %s842 = ssub.s32 576, 576
      %843 = vsyncadd [#allocation4], %s842
      %s844 = sshll.u32 [#allocation3], 4
      %s845 = int_to_ptr.vmem [resolvable:$true] %s844
      %850 = dma.vmem_to_hbm [thread:$0]  %s845, 576, %s3, [#allocation4], 192, 192, 12
    $region25: #{_pallas_linear.1} parent=1 // pred_fallthru
      _
    // Predicated region
    $region26: #{_pallas_linear.1} parent=1 // pred_check
      _
    $region27: #{_pallas_linear.1} parent=1 // pred_check_branch
      %852 = sbr.rel (0) target = $region29
    $region28: #{_pallas_linear.1} parent=1 // pred_region
      %853 = dma.done [#allocation4], 576
    $region29: #{_pallas_linear.1} parent=1 // pred_fallthru
      _
    %854 = vsyncpa [#allocation4], 1

</llo_original>
